<compile_context>
chip_gen: v7x
topology: tpu7x:2x2x1
jax: 0.10.0
libtpu: 0.0.40
codegen_flags: <defaults>
</compile_context>

<pallas_src>
import functools

import jax
import jax.numpy as jnp
from jax.experimental import pallas as pl
from jax.experimental.pallas import tpu as pltpu


def conv_bn_relu_kernel(w_ref, p_ref, g_ref, b_ref, o_ref, *, eps):
    """Fused conv-as-GEMM + batchnorm(batch stats) + relu, all lane-dense.

    w_ref: (Cout, K)   conv weights reshaped to (cout, kh*kw*cin), VMEM
    p_ref: (K, M)      im2col patches, M = N*Ho*Wo on the lane axis, VMEM
    g_ref: (Cout, 1)   BN gamma
    b_ref: (Cout, 1)   BN beta
    o_ref: (Cout, M)   output (channel-major; wrapper transposes back to NCHW)
    """
    # --- convolution: one MXU GEMM, output lane-dense (Cout sublanes, M lanes).
    y = jnp.dot(w_ref[...], p_ref[...], preferred_element_type=jnp.float32)

    # --- batchnorm batch statistics (per channel over all N*Ho*Wo pixels).
    # Two-step mean/var (not E[y^2]-E[y]^2) to avoid cancellation; y is resident.
    inv_m = 1.0 / y.shape[1]
    mean = jnp.sum(y, axis=1, keepdims=True) * inv_m                 # (Cout, 1)
    var = jnp.sum((y - mean) ** 2, axis=1, keepdims=True) * inv_m    # biased var
    scale = g_ref[...] * jax.lax.rsqrt(var + eps)                    # (Cout, 1)
    shift = b_ref[...] - mean * scale                                # (Cout, 1)

    # --- normalize + affine + ReLU; dense 512-lane VPU ops and unmasked stores.
    o_ref[...] = jnp.maximum(y * scale + shift, 0.0)


def conv_bn_relu(x_nchw, w_oihw, conv_bias, gamma, beta,
                 *, stride=1, padding=1, eps=1e-5):
    # conv_bias is exactly cancelled by the BN mean subtraction (training-mode
    # BN), so it is intentionally not used by the kernel.
    del conv_bias
    assert stride == 1, "kernel implements stride=1"
    N, Cin, H, W = x_nchw.shape
    Cout, Cin_w, KH, KW = w_oihw.shape
    assert Cin == Cin_w
    Ho = H + 2 * padding - KH + 1
    Wo = W + 2 * padding - KW + 1
    M = N * Ho * Wo
    K = KH * KW * Cin

    # --- layout plumbing (outside the kernel): NCHW -> padded NHWC -> im2col.
    x_nhwc = jnp.transpose(x_nchw, (0, 2, 3, 1)).astype(jnp.float32)
    x_pad = jnp.pad(x_nhwc, ((0, 0), (padding, padding), (padding, padding), (0, 0)))
    patches = jnp.concatenate(
        [x_pad[:, kh:kh + Ho, kw:kw + Wo, :] for kh in range(KH) for kw in range(KW)],
        axis=-1)                                      # (N, Ho, Wo, KH*KW*Cin)
    p_t = patches.reshape(M, K).T                     # (K, M): pixels on lanes
    # Weight K-ordering must match patches: (kh, kw, cin).
    w2 = jnp.transpose(w_oihw, (0, 2, 3, 1)).reshape(Cout, K).astype(jnp.float32)
    g = gamma.reshape(Cout, 1).astype(jnp.float32)
    b = beta.reshape(Cout, 1).astype(jnp.float32)
    # TODO(synk): for realistic channel counts cast p_t / w2 to bfloat16 for the
    # MXU (v6e/v7x), keeping the f32 epilogue; left f32 here so tiny-K numerics
    # stay within the tight tolerance of the f32 reference.

    out_cm = pl.pallas_call(
        functools.partial(conv_bn_relu_kernel, eps=eps),
        out_shape=jax.ShapeDtypeStruct((Cout, M), jnp.float32),
        grid=(1,),
        in_specs=[
            pl.BlockSpec((Cout, K), lambda i: (0, 0)),
            pl.BlockSpec((K, M), lambda i: (0, 0)),
            pl.BlockSpec((Cout, 1), lambda i: (0, 0)),
            pl.BlockSpec((Cout, 1), lambda i: (0, 0)),
        ],
        out_specs=pl.BlockSpec((Cout, M), lambda i: (0, 0)),
        compiler_params=pltpu.CompilerParams(
            dimension_semantics=("arbitrary",)),
    )(w2, p_t, g, b)
    # TODO(synk): for non-toy shapes, tile the grid over M (>=512-lane blocks)
    # with "parallel" semantics, accumulate BN sum/sumsq across tiles and
    # normalize in a second phase, and set vmem_limit_bytes explicitly; at
    # 2x16x16, Cin=4 -> Cout=8 everything fits comfortably in one block.

    # (Cout, N*Ho*Wo) -> NCHW
    return jnp.transpose(out_cm.reshape(Cout, N, Ho, Wo), (1, 0, 2, 3))


def _reference(x_nchw, w_oihw, conv_bias, gamma, beta, *, padding=1, eps=1e-5):
    """Pure-JAX reference matching the PyTorch module (training-mode BN)."""
    y = jax.lax.conv_general_dilated(
        x_nchw, w_oihw, window_strides=(1, 1),
        padding=[(padding, padding), (padding, padding)],
        dimension_numbers=("NCHW", "OIHW", "NCHW"))
    y = y + conv_bias.reshape(1, -1, 1, 1)
    mean = jnp.mean(y, axis=(0, 2, 3), keepdims=True)
    var = jnp.mean((y - mean) ** 2, axis=(0, 2, 3), keepdims=True)
    y = (y - mean) * jax.lax.rsqrt(var + eps)
    y = y * gamma.reshape(1, -1, 1, 1) + beta.reshape(1, -1, 1, 1)
    return jnp.maximum(y, 0.0)


if __name__ == "__main__":
    # Module config: ConvBnRelu(in_channels=4, out_channels=8, kernel_size=3,
    #                           stride=1, padding=1)
    in_channels, out_channels, ksize, padding = 4, 8, 3, 1
    N, H, W = 2, 16, 16

    key = jax.random.PRNGKey(0)
    kx, kw, kb = jax.random.split(key, 3)

    x = jax.random.normal(kx, (N, in_channels, H, W), dtype=jnp.float32)
    # Deterministic synthetic parameters (shapes per nn.Conv2d / nn.BatchNorm2d).
    conv_w = 0.1 * jax.random.normal(
        kw, (out_channels, in_channels, ksize, ksize), dtype=jnp.float32)
    conv_b = 0.05 * jax.random.normal(kb, (out_channels,), dtype=jnp.float32)
    bn_gamma = jnp.ones((out_channels,), jnp.float32)   # PyTorch BN weight init
    bn_beta = jnp.zeros((out_channels,), jnp.float32)   # PyTorch BN bias init

    out = conv_bn_relu(x, conv_w, conv_b, bn_gamma, bn_beta,
                       stride=1, padding=padding)
    out = jax.block_until_ready(out)

    ref = _reference(x, conv_w, conv_b, bn_gamma, bn_beta, padding=padding)
    assert out.shape == (N, out_channels, H, W), out.shape
    assert jnp.max(jnp.abs(out - ref)) < 1e-4, float(jnp.max(jnp.abs(out - ref)))

    print("KERNEL_OK")
</pallas_src>

<mosaic_0001>
module attributes {stable_mosaic.version = 11 : i64} {
  func.func @conv_bn_relu_kernel(%arg0: i32, %arg1: memref<8x36xf32, #tpu.memory_space<vmem>>, %arg2: memref<36x512xf32, #tpu.memory_space<vmem>>, %arg3: memref<8x1xf32, #tpu.memory_space<vmem>>, %arg4: memref<8x1xf32, #tpu.memory_space<vmem>>, %arg5: memref<8x512xf32, #tpu.memory_space<vmem>>) attributes {dimension_semantics = [#tpu.dimension_semantics<arbitrary>], iteration_bounds = array<i64: 1>, scalar_prefetch = 0 : i64, scratch_operands = 0 : i64, tpu.core_type = #tpu.core_type<tc>, window_params = [{pipeline_mode = #tpu.pipeline_mode<synchronous>, transform_indices = @transform_0, window_bounds = array<i64: 8, 36>}, {pipeline_mode = #tpu.pipeline_mode<synchronous>, transform_indices = @transform_1, window_bounds = array<i64: 36, 512>}, {pipeline_mode = #tpu.pipeline_mode<synchronous>, transform_indices = @transform_2, window_bounds = array<i64: 8, 1>}, {pipeline_mode = #tpu.pipeline_mode<synchronous>, transform_indices = @transform_3, window_bounds = array<i64: 8, 1>}, {pipeline_mode = #tpu.pipeline_mode<synchronous>, transform_indices = @transform_4, window_bounds = array<i64: 8, 512>}]} {
    %c0 = arith.constant 0 : index
    %c0_0 = arith.constant 0 : index
    %0 = vector.load %arg1[%c0, %c0_0] : memref<8x36xf32, #tpu.memory_space<vmem>>, vector<8x36xf32>
    %c0_1 = arith.constant 0 : index
    %c0_2 = arith.constant 0 : index
    %1 = vector.load %arg2[%c0_1, %c0_2] : memref<36x512xf32, #tpu.memory_space<vmem>>, vector<36x512xf32>
    %cst = arith.constant dense<0.000000e+00> : vector<8x512xf32>
    %2 = tpu.matmul %0, %1, %cst {dimension_numbers = #tpu.dot_dimension_numbers<[1], [0], [0], [1], [0, 0, 1, 1], [], []>} : vector<8x36xf32>, vector<36x512xf32>, vector<8x512xf32> -> vector<8x512xf32>
    %cst_3 = arith.constant dense<0.000000e+00> : vector<8xf32>
    %3 = vector.multi_reduction <add>, %2, %cst_3 [1] : vector<8x512xf32> to vector<8xf32>
    %4 = vector.shape_cast %3 : vector<8xf32> to vector<8x1xf32>
    %cst_4 = arith.constant 0.001953125 : f32
    %5 = vector.broadcast %cst_4 : f32 to vector<8x1xf32>
    %6 = arith.mulf %4, %5 : vector<8x1xf32>
    %7 = vector.broadcast %6 : vector<8x1xf32> to vector<8x512xf32>
    %8 = arith.subf %2, %7 : vector<8x512xf32>
    %9 = arith.mulf %8, %8 : vector<8x512xf32>
    %cst_5 = arith.constant dense<0.000000e+00> : vector<8xf32>
    %10 = vector.multi_reduction <add>, %9, %cst_5 [1] : vector<8x512xf32> to vector<8xf32>
    %11 = vector.shape_cast %10 : vector<8xf32> to vector<8x1xf32>
    %cst_6 = arith.constant 0.001953125 : f32
    %12 = vector.broadcast %cst_6 : f32 to vector<8x1xf32>
    %13 = arith.mulf %11, %12 : vector<8x1xf32>
    %c0_7 = arith.constant 0 : index
    %c0_8 = arith.constant 0 : index
    %14 = vector.load %arg3[%c0_7, %c0_8] : memref<8x1xf32, #tpu.memory_space<vmem>>, vector<8x1xf32>
    %cst_9 = arith.constant 9.99999974E-6 : f32
    %15 = vector.broadcast %cst_9 : f32 to vector<8x1xf32>
    %16 = arith.addf %13, %15 : vector<8x1xf32>
    %17 = math.rsqrt %16 : vector<8x1xf32>
    %18 = arith.mulf %14, %17 : vector<8x1xf32>
    %c0_10 = arith.constant 0 : index
    %c0_11 = arith.constant 0 : index
    %19 = vector.load %arg4[%c0_10, %c0_11] : memref<8x1xf32, #tpu.memory_space<vmem>>, vector<8x1xf32>
    %20 = arith.mulf %6, %18 : vector<8x1xf32>
    %21 = arith.subf %19, %20 : vector<8x1xf32>
    %22 = vector.broadcast %18 : vector<8x1xf32> to vector<8x512xf32>
    %23 = arith.mulf %2, %22 : vector<8x512xf32>
    %24 = vector.broadcast %21 : vector<8x1xf32> to vector<8x512xf32>
    %25 = arith.addf %23, %24 : vector<8x512xf32>
    %cst_12 = arith.constant 0.000000e+00 : f32
    %26 = vector.broadcast %cst_12 : f32 to vector<8x512xf32>
    %27 = arith.maximumf %25, %26 : vector<8x512xf32>
    %c0_13 = arith.constant 0 : index
    %c0_14 = arith.constant 0 : index
    %28 = vector.load %arg5[%c0_13, %c0_14] : memref<8x512xf32, #tpu.memory_space<vmem>>, vector<8x512xf32>
    tpu.vector_store %arg5[%c0_13, %c0_14], %27 {strides = array<i32>} : memref<8x512xf32, #tpu.memory_space<vmem>>, vector<8x512xf32>,
    return
  }
  func.func @transform_0(%arg0: i32) -> (i32, i32) {
    %c0_i32 = arith.constant 0 : i32
    %c0_i32_0 = arith.constant 0 : i32
    %c0_i32_1 = arith.constant 0 : i32
    return %c0_i32, %c0_i32_0 : i32, i32
  }
  func.func @transform_1(%arg0: i32) -> (i32, i32) {
    %c0_i32 = arith.constant 0 : i32
    %c0_i32_0 = arith.constant 0 : i32
    %c0_i32_1 = arith.constant 0 : i32
    return %c0_i32, %c0_i32_0 : i32, i32
  }
  func.func @transform_2(%arg0: i32) -> (i32, i32) {
    %c0_i32 = arith.constant 0 : i32
    %c0_i32_0 = arith.constant 0 : i32
    %c0_i32_1 = arith.constant 0 : i32
    return %c0_i32, %c0_i32_0 : i32, i32
  }
  func.func @transform_3(%arg0: i32) -> (i32, i32) {
    %c0_i32 = arith.constant 0 : i32
    %c0_i32_0 = arith.constant 0 : i32
    %c0_i32_1 = arith.constant 0 : i32
    return %c0_i32, %c0_i32_0 : i32, i32
  }
  func.func @transform_4(%arg0: i32) -> (i32, i32) {
    %c0_i32 = arith.constant 0 : i32
    %c0_i32_0 = arith.constant 0 : i32
    %c0_i32_1 = arith.constant 0 : i32
    return %c0_i32, %c0_i32_0 : i32, i32
  }
}

</mosaic_0001>

<llo_original>
// kernel: tpu_custom_call.1
$region0: #{tpu_custom_call.1}
  #allocation0 [shape = 'u32[]', space=smem, size = 0x4, offset = 0x4, fixed_abs, tag = 'smem constant byte address 0x4 - core index']
  #allocation1 [shape = 'u32[144,128]{1,0:T(1,128)}', space=vmem, size = 0x12000, scoped, tag = 'internal scratch']
  %s0 = inlined_call_operand.vmem [shape: f32[8,36], index: 0, kind: input, shape index: {}]
  %s1 = inlined_call_operand.hbm [shape: f32[36,512], index: 1, kind: input, shape index: {}]
  %s2 = inlined_call_operand.vmem [shape: f32[8,1], index: 2, kind: input, shape index: {}]
  %s3 = inlined_call_operand.vmem [shape: f32[8,1], index: 3, kind: input, shape index: {}]
  %s4 = inlined_call_operand.hbm [shape: f32[8,512], index: 4, kind: output, shape index: {}]
  %s5 = sld [smem:[#allocation0]]
  $region30: #{tpu_custom_call.1} parent=0
    _
  %s7 = ssub.s32 1, %s5
  %s8 = scalar_select 0, %s7, %s5
  $region1: #{tpu_custom_call.1} parent=0
    #allocation2 [shape = 'u8[81920]{0}', space=vmem, size = 0x14000, scoped, tag = 'input window, operand 1, single buffered']
    #allocation3 [shape = 's32[1]{0}', space=sflag, size = 0x4, scoped, tag = 'scoped memory for tpu_custom_call.1']
    #allocation4 [shape = 's32[1]{0}', space=sflag, size = 0x4, scoped, tag = 'scoped memory for tpu_custom_call.1']
    #allocation5 [shape = 'u8[16384]{0}', space=vmem, size = 0x4000, scoped, tag = 'output window, operand 0, single buffered']
    %9 = vsyncpa [#allocation3], 0
    %10 = vsyncpa [#allocation4], 0
    // Predicated region
    $region2: #{tpu_custom_call.1} parent=1 // pred_check
      _
    $region3: #{tpu_custom_call.1} parent=1 // pred_check_branch
      %12 = sbr.rel (0) target = $region5
    $region4: #{tpu_custom_call.1} parent=1 // pred_region
      _
    $region5: #{tpu_custom_call.1} parent=1 // pred_fallthru
      _
    // Predicated region
    $region6: #{tpu_custom_call.1} parent=1 // pred_check
      _
    $region7: #{tpu_custom_call.1} parent=1 // pred_check_branch
      %14 = sbr.rel (0) target = $region9
    $region8: #{tpu_custom_call.1} parent=1 // pred_region
      %s16 = ssub.s32 2560, 2560
      %17 = vsyncadd [#allocation3], %s16
      %s18 = sshll.u32 [#allocation2], 4
      %s19 = int_to_ptr.vmem [resolvable:$true] %s18
      %24 = dma.hbm_to_vmem [thread:$0]  %s1, 2560, %s19, [#allocation3], 512, 512, 32
    $region9: #{tpu_custom_call.1} parent=1 // pred_fallthru
      _
    // Predicated region
    $region10: #{tpu_custom_call.1} parent=1 // pred_check
      _
    $region11: #{tpu_custom_call.1} parent=1 // pred_check_branch
      %26 = sbr.rel (0) target = $region13
    $region12: #{tpu_custom_call.1} parent=1 // pred_region
      _
    $region13: #{tpu_custom_call.1} parent=1 // pred_fallthru
      _
    // Predicated region
    $region14: #{tpu_custom_call.1} parent=1 // pred_check
      _
    $region15: #{tpu_custom_call.1} parent=1 // pred_check_branch
      %28 = sbr.rel (0) target = $region17
    $region16: #{tpu_custom_call.1} parent=1 // pred_region
      _
    $region17: #{tpu_custom_call.1} parent=1 // pred_fallthru
      _
    // Predicated region
    $region18: #{tpu_custom_call.1} parent=1 // pred_check
      _
    $region19: #{tpu_custom_call.1} parent=1 // pred_check_branch
      %30 = sbr.rel (0) target = $region21
    $region20: #{tpu_custom_call.1} parent=1 // pred_region
      %31 = dma.done [#allocation3], 2560
    $region21: #{tpu_custom_call.1} parent=1 // pred_fallthru
      _
    %v32 = vld [vmem:[%s0] sm:$0xff]
    %v33 = vld [vmem:[#allocation2] sm:$0xff]
    %v34 = vld [vmem:[#allocation2 + $0x8] sm:$0xff]
    %v35 = vld [vmem:[#allocation2 + $0x10] sm:$0xff]
    %v36 = vld [vmem:[#allocation2 + $0x18] sm:$0xff]
    %v37 = vld [vmem:[#allocation2 + $0x20] sm:$0xff]
    %v38 = vld [vmem:[#allocation2 + $0x28] sm:$0xff]
    %v39 = vld [vmem:[#allocation2 + $0x30] sm:$0xff]
    %v40 = vld [vmem:[#allocation2 + $0x38] sm:$0xff]
    %v41 = vld [vmem:[#allocation2 + $0x40] sm:$0xff]
    %v42 = vld [vmem:[#allocation2 + $0x48] sm:$0xff]
    %v43 = vld [vmem:[#allocation2 + $0x50] sm:$0xff]
    %v44 = vld [vmem:[#allocation2 + $0x58] sm:$0xff]
    %v45 = vld [vmem:[#allocation2 + $0x60] sm:$0xff]
    %v46 = vld [vmem:[#allocation2 + $0x68] sm:$0xff]
    %v47 = vld [vmem:[#allocation2 + $0x70] sm:$0xff]
    %v48 = vld [vmem:[#allocation2 + $0x78] sm:$0xff]
    %v49 = vld [vmem:[#allocation2 + $0x80] sm:$0xf]
    %v50 = vld [vmem:[#allocation2 + $0x88] sm:$0xf]
    %v51 = vld [vmem:[#allocation2 + $0x90] sm:$0xf]
    %v52 = vld [vmem:[#allocation2 + $0x98] sm:$0xf]
    %vm53 = vcmask 293888
    %v55 = vsel %vm53, %v32, 0
    %vm57 = vcmask 1043456
    %v59 = vsel %vm57, %v49, 0
    %v62 = vsel %vm57, %v50, 0
    %v65 = vsel %vm57, %v51, 0
    %v68 = vsel %vm57, %v52, 0
    %70 = vmatprep.subr.mxu0 %v34
    %71 = vmatpush1.msra.mxu0 %v33
    %72 = vmatprep.subr.mxu0 %v38
    %73 = vmatpush1.msra.mxu0 %v37
    %74 = vmatprep.subr.mxu0 %v42
    %75 = vmatpush1.msra.mxu0 %v41
    %76 = vmatprep.subr.mxu0 %v46
    %77 = vmatpush1.msra.mxu0 %v45
    %78 = vmatprep.subr.mxu0 %v62
    %79 = vmatpush1.msra.mxu0 %v59
    %80 = vmatprep.subr.mxu0 0.0
    %81 = vmatpush1.msra.mxu0 0.0
    %82 = vmatprep.subr.mxu0 0.0
    %83 = vmatpush1.msra.mxu0 0.0
    %84 = vmatprep.subr.mxu0 0.0
    %85 = vmatpush1.msra.mxu0 0.0
    %86 = vmatprep.subr.mxu0 0.0
    %87 = vmatpush1.msra.mxu0 0.0
    %88 = vmatprep.subr.mxu0 0.0
    %89 = vmatpush1.msra.mxu0 0.0
    %90 = vmatprep.subr.mxu0 0.0
    %91 = vmatpush1.msra.mxu0 0.0
    %92 = vmatprep.subr.mxu0 0.0
    %93 = vmatpush1.msra.mxu0 0.0
    %94 = vmatprep.subr.mxu0 0.0
    %95 = vmatpush1.msra.mxu0 0.0
    %96 = vmatprep.subr.mxu0 0.0
    %97 = vmatpush1.msra.mxu0 0.0
    %98 = vmatprep.subr.mxu0 0.0
    %99 = vmatpush1.msra.mxu0 0.0
    %100 = vmatprep.subr.mxu0 0.0
    %101 = vmatpush1.msra.mxu0 0.0
    %102 = vmatprep.subr.mxu0 0.0
    %103 = vmatpush1.msra.mxu0 0.0
    %104 = vmatprep.subr.mxu0 0.0
    %105 = vmatpush1.msra.mxu0 0.0
    %106 = vmatprep.subr.mxu0 0.0
    %107 = vmatpush1.msra.mxu0 0.0
    %108 = vmatprep.subr.mxu0 0.0
    %109 = vmatpush1.msra.mxu0 0.0
    %110 = vmatprep.subr.mxu0 0.0
    %111 = vmatpush1.msra.mxu0 0.0
    %112 = vmatprep.subr.mxu0 0.0
    %113 = vmatpush1.msra.mxu0 0.0
    %114 = vmatprep.subr.mxu0 0.0
    %115 = vmatpush1.msra.mxu0 0.0
    %116 = vmatprep.subr.mxu0 0.0
    %117 = vmatpush1.msra.mxu0 0.0
    %118 = vmatprep.subr.mxu0 0.0
    %119 = vmatpush1.msra.mxu0 0.0
    %120 = vmatprep.subr.mxu0 0.0
    %121 = vmatpush1.msra.mxu0 0.0
    %122 = vmatprep.subr.mxu0 0.0
    %123 = vmatpush1.msra.mxu0 0.0
    %124 = vmatprep.subr.mxu0 0.0
    %125 = vmatpush1.msra.mxu0 0.0
    %126 = vmatprep.subr.mxu0 0.0
    %127 = vmatpush1.msra.mxu0 0.0
    %128 = vmatprep.subr.mxu0 0.0
    %129 = vmatpush1.msra.mxu0 0.0
    %130 = vmatprep.subr.mxu0 0.0
    %131 = vmatpush1.msra.mxu0 0.0
    %132 = vmatprep.subr.mxu0 0.0
    %133 = vmatpush1.msra.mxu0 0.0
    %134 = vmatprep.mubr.f32.mxu0 0.0
    %135 = vmatmul.mubr.f32.gmra.mrb[0].mxu0 %v55
    %v136 = vpop.f32.mrb[0].mxu0
    %v137 = vadd.f32 0.0, %v136
    %v138 = vpop.f32.mrb[0].mxu0
    %v139 = vadd.f32 0.0, %v138
    %140 = vdwg.mxu0
    %141 = vmatprep.subr.mxu0 %v36
    %142 = vmatpush1.msra.mxu0 %v35
    %143 = vmatprep.subr.mxu0 %v40
    %144 = vmatpush1.msra.mxu0 %v39
    %145 = vmatprep.subr.mxu0 %v44
    %146 = vmatpush1.msra.mxu0 %v43
    %147 = vmatprep.subr.mxu0 %v48
    %148 = vmatpush1.msra.mxu0 %v47
    %149 = vmatprep.subr.mxu0 %v68
    %150 = vmatpush1.msra.mxu0 %v65
    %151 = vmatprep.subr.mxu0 0.0
    %152 = vmatpush1.msra.mxu0 0.0
    %153 = vmatprep.subr.mxu0 0.0
    %154 = vmatpush1.msra.mxu0 0.0
    %155 = vmatprep.subr.mxu0 0.0
    %156 = vmatpush1.msra.mxu0 0.0
    %157 = vmatprep.subr.mxu0 0.0
    %158 = vmatpush1.msra.mxu0 0.0
    %159 = vmatprep.subr.mxu0 0.0
    %160 = vmatpush1.msra.mxu0 0.0
    %161 = vmatprep.subr.mxu0 0.0
    %162 = vmatpush1.msra.mxu0 0.0
    %163 = vmatprep.subr.mxu0 0.0
    %164 = vmatpush1.msra.mxu0 0.0
    %165 = vmatprep.subr.mxu0 0.0
    %166 = vmatpush1.msra.mxu0 0.0
    %167 = vmatprep.subr.mxu0 0.0
    %168 = vmatpush1.msra.mxu0 0.0
    %169 = vmatprep.subr.mxu0 0.0
    %170 = vmatpush1.msra.mxu0 0.0
    %171 = vmatprep.subr.mxu0 0.0
    %172 = vmatpush1.msra.mxu0 0.0
    %173 = vmatprep.subr.mxu0 0.0
    %174 = vmatpush1.msra.mxu0 0.0
    %175 = vmatprep.subr.mxu0 0.0
    %176 = vmatpush1.msra.mxu0 0.0
    %177 = vmatprep.subr.mxu0 0.0
    %178 = vmatpush1.msra.mxu0 0.0
    %179 = vmatprep.subr.mxu0 0.0
    %180 = vmatpush1.msra.mxu0 0.0
    %181 = vmatprep.subr.mxu0 0.0
    %182 = vmatpush1.msra.mxu0 0.0
    %183 = vmatprep.subr.mxu0 0.0
    %184 = vmatpush1.msra.mxu0 0.0
    %185 = vmatprep.subr.mxu0 0.0
    %186 = vmatpush1.msra.mxu0 0.0
    %187 = vmatprep.subr.mxu0 0.0
    %188 = vmatpush1.msra.mxu0 0.0
    %189 = vmatprep.subr.mxu0 0.0
    %190 = vmatpush1.msra.mxu0 0.0
    %191 = vmatprep.subr.mxu0 0.0
    %192 = vmatpush1.msra.mxu0 0.0
    %193 = vmatprep.subr.mxu0 0.0
    %194 = vmatpush1.msra.mxu0 0.0
    %195 = vmatprep.subr.mxu0 0.0
    %196 = vmatpush1.msra.mxu0 0.0
    %197 = vmatprep.subr.mxu0 0.0
    %198 = vmatpush1.msra.mxu0 0.0
    %199 = vmatprep.subr.mxu0 0.0
    %200 = vmatpush1.msra.mxu0 0.0
    %201 = vmatprep.subr.mxu0 0.0
    %202 = vmatpush1.msra.mxu0 0.0
    %203 = vmatprep.subr.mxu0 0.0
    %204 = vmatpush1.msra.mxu0 0.0
    %205 = vmatprep.mubr.f32.mxu0 0.0
    %206 = vmatmul.mubr.f32.gmra.mrb[0].mxu0 %v55
    %v207 = vpop.f32.mrb[0].mxu0
    %v208 = vadd.f32 0.0, %v207
    %v209 = vpop.f32.mrb[0].mxu0
    %v210 = vadd.f32 0.0, %v209
    %211 = vdwg.mxu0
    %v212 = vadd.f32 %v137, %v139
    %v213 = vadd.f32 %v212, %v208
    %v214 = vadd.f32 %v213, %v210
    %215 = vadd.xlane.f32.xlu0 %v214
    %v216 = vpop.xlane.xlu0 %215
    %v217 = vmul.f32 %v216, 0.001953125
    %v218 = vsub.f32 %v137, %v217
    %v219 = vsub.f32 %v139, %v217
    %v220 = vsub.f32 %v208, %v217
    %v221 = vsub.f32 %v210, %v217
    %v222 = vmul.f32 %v218, %v218
    %v223 = vmul.f32 %v219, %v219
    %v224 = vmul.f32 %v220, %v220
    %v225 = vmul.f32 %v221, %v221
    %v226 = vadd.f32 %v222, %v223
    %v227 = vadd.f32 %v226, %v224
    %v228 = vadd.f32 %v227, %v225
    %229 = vadd.xlane.f32.xlu0 %v228
    %v230 = vpop.xlane.xlu0 %229
    %v231 = vmul.f32 %v230, 0.001953125
    %v232 = vld [vmem:[%s2] sm:$0xff]
    %v233 = vadd.f32 %v231, 1e-05
    %v234 = vrsqrt.pop %v233
    %v235 = vmul.f32 %v232, %v234
    %v236 = vld [vmem:[%s3] sm:$0xff]
    %v237 = vmul.f32 %v217, %v235
    %v238 = vsub.f32 %v236, %v237
    %240 = vset.pattern.permute.xlu0 0
    %241 = vperm.xlu0 %240, %v235
    %v242 = vpop.permute.xlu0 %241
    %v244 = vmul.f32 %v137, %v242
    %v245 = vmul.f32 %v139, %v242
    %v246 = vmul.f32 %v208, %v242
    %v247 = vmul.f32 %v210, %v242
    %249 = vset.pattern.permute.xlu0 0
    %250 = vperm.xlu0 %249, %v238
    %v251 = vpop.permute.xlu0 %250
    %v253 = vadd.f32 %v244, %v251
    %v254 = vadd.f32 %v245, %v251
    %v255 = vadd.f32 %v246, %v251
    %v256 = vadd.f32 %v247, %v251
    %v257 = vmax.f32 %v253, 0.0
    %v258 = vmax.f32 %v254, 0.0
    %v259 = vmax.f32 %v255, 0.0
    %v260 = vmax.f32 %v256, 0.0
    %261 = vst [vmem:[#allocation5] sm:$0xff] %v257
    %262 = vst [vmem:[#allocation5 + $0x8] sm:$0xff] %v258
    %263 = vst [vmem:[#allocation5 + $0x10] sm:$0xff] %v259
    %264 = vst [vmem:[#allocation5 + $0x18] sm:$0xff] %v260
    // Predicated region
    $region22: #{tpu_custom_call.1} parent=1 // pred_check
      _
    $region23: #{tpu_custom_call.1} parent=1 // pred_check_branch
      %266 = sbr.rel (0) target = $region25
    $region24: #{tpu_custom_call.1} parent=1 // pred_region
      %s268 = ssub.s32 512, 512
      %269 = vsyncadd [#allocation4], %s268
      %s271 = sshll.u32 [#allocation5], 4
      %s272 = int_to_ptr.vmem [resolvable:$true] %s271
      %274 = dma.vmem_to_hbm [thread:$0]  %s272, 512, %s4, [#allocation4]
    $region25: #{tpu_custom_call.1} parent=1 // pred_fallthru
      _
    // Predicated region
    $region26: #{tpu_custom_call.1} parent=1 // pred_check
      _
    $region27: #{tpu_custom_call.1} parent=1 // pred_check_branch
      %276 = sbr.rel (0) target = $region29
    $region28: #{tpu_custom_call.1} parent=1 // pred_region
      %277 = dma.done [#allocation4], 512
    $region29: #{tpu_custom_call.1} parent=1 // pred_fallthru
      _
    %278 = vsyncpa [#allocation3], 1
    %279 = vsyncpa [#allocation4], 1

</llo_original>
